<compile_context>
chip_gen: v7x
topology: tpu7x:2x2x1
jax: 0.10.0
libtpu: 0.0.40
codegen_flags: <defaults>
</compile_context>

<pallas_src>
import functools

import jax
import jax.numpy as jnp
from jax import lax
from jax.experimental import pallas as pl
from jax.experimental.pallas import tpu as pltpu


def _round_up(x: int, m: int) -> int:
    return ((x + m - 1) // m) * m


def _pick_tile(dim_padded: int, candidates=(512, 384, 256, 128)) -> int:
    """Largest lane-aligned tile that divides the padded dimension."""
    for t in candidates:
        if dim_padded % t == 0:
            return t
    return 128  # dim_padded is always a multiple of 128


def _residual_linear_kernel(x_mm_ref, w_ref, x_res_ref, b_ref, o_ref, acc_ref):
    k = pl.program_id(2)

    @pl.when(k == 0)
    def _():
        acc_ref[...] = jnp.zeros_like(acc_ref)

    # x_mm: (tm, tk), w: (tn, tk) in PyTorch (out, in) layout.
    # Contract dim 1 of both -> (tm, tn) == x @ W^T, accumulated in f32.
    acc_ref[...] += lax.dot_general(
        x_mm_ref[...],
        w_ref[...],
        dimension_numbers=(((1,), (1,)), ((), ())),
        preferred_element_type=jnp.float32,
    )

    @pl.when(k == pl.num_programs(2) - 1)
    def _():
        acc = acc_ref[...] + b_ref[...].astype(jnp.float32)   # bias once, post-K
        relu = jnp.maximum(acc, 0.0)
        o_ref[...] = (
            x_res_ref[...].astype(jnp.float32) + relu
        ).astype(o_ref.dtype)


@functools.partial(jax.jit, static_argnames=())
def residual_linear(x, weight, bias):
    """y = x + relu(x @ weight.T + bias)

    x:      (M, D)
    weight: (D, D)   -- PyTorch nn.Linear convention (out_features, in_features)
    bias:   (D,)
    """
    M, D = x.shape
    assert weight.shape == (D, D) and bias.shape == (D,)

    # --- lane-dense padding -------------------------------------------------
    D_pad = _round_up(D, 128)
    M_pad = _round_up(M, 8)
    if M_pad >= 256:
        M_pad = _round_up(M, 128)
        tm = 128
    else:
        tm = M_pad  # single M tile; second-last dim is a multiple of 8

    tn = _pick_tile(D_pad)
    tk = _pick_tile(D_pad)

    x_p = x if (M_pad == M and D_pad == D) else jnp.pad(
        x, ((0, M_pad - M), (0, D_pad - D)))
    w_p = weight if D_pad == D else jnp.pad(
        weight, ((0, D_pad - D), (0, D_pad - D)))
    b_p = (bias if D_pad == D else jnp.pad(bias, (0, D_pad - D))).reshape(1, D_pad)

    grid = (M_pad // tm, D_pad // tn, D_pad // tk)

    itemsize = jnp.dtype(x.dtype).itemsize
    cost = pl.CostEstimate(
        flops=2 * M_pad * D_pad * D_pad,
        transcendentals=0,
        bytes_accessed=(
            2 * M_pad * D_pad * itemsize            # x (matmul LHS + residual)
            + D_pad * D_pad * itemsize              # weight
            + D_pad * itemsize                      # bias
            + M_pad * D_pad * itemsize              # output
        ),
    )

    out_p = pl.pallas_call(
        _residual_linear_kernel,
        out_shape=jax.ShapeDtypeStruct((M_pad, D_pad), x.dtype),
        grid_spec=pltpu.PrefetchScalarGridSpec(
            num_scalar_prefetch=0,
            grid=grid,
            in_specs=[
                # x for the matmul LHS: (i, k) tiles.
                pl.BlockSpec((tm, tk), lambda i, j, k: (i, k)),
                # W in (out, in) layout: (j, k) tiles -> no wrapper transpose.
                pl.BlockSpec((tn, tk), lambda i, j, k: (j, k)),
                # x again for the residual add: (i, j) tiles.
                pl.BlockSpec((tm, tn), lambda i, j, k: (i, j)),
                # bias: (0, j) tile, resident across the K reduction.
                pl.BlockSpec((1, tn), lambda i, j, k: (0, j)),
            ],
            out_specs=pl.BlockSpec((tm, tn), lambda i, j, k: (i, j)),
            scratch_shapes=[pltpu.VMEM((tm, tn), jnp.float32)],
        ),
        compiler_params=pltpu.CompilerParams(
            # M / N shard across v7x's two TensorCores; K is the reduction.
            dimension_semantics=("parallel", "parallel", "arbitrary"),
            # Tiles above stay well under 32 MiB even double-buffered; this is
            # safe on v5e (16 MiB default), v6e and v7x (64 MiB physical/TC).
            vmem_limit_bytes=32 * 1024 * 1024,
        ),
        cost_estimate=cost,
    )(x_p, w_p, x_p, b_p)

    if M_pad == M and D_pad == D:
        return out_p
    return out_p[:M, :D]


if __name__ == "__main__":
    key = jax.random.PRNGKey(0)
    k_x, k_w, k_b = jax.random.split(key, 3)

    M, D = 8, 32  # small shapes consistent with ResidualLinear(d_int=32)

    x = jax.random.normal(k_x, (M, D), dtype=jnp.float32)
    weight = jax.random.normal(k_w, (D, D), dtype=jnp.float32) * 0.1
    bias = jax.random.normal(k_b, (D,), dtype=jnp.float32) * 0.1

    out = residual_linear(x, weight, bias)
    out = jax.block_until_ready(out)

    # Pure-JAX reference check of forward semantics.
    ref = x + jnp.maximum(x @ weight.T + bias, 0.0)
    assert out.shape == ref.shape, "shape mismatch vs reference"
    assert jnp.allclose(out, ref, atol=1e-5, rtol=1e-5), "mismatch vs reference"

    print("KERNEL_OK")
</pallas_src>

<mosaic_0001>
module attributes {stable_mosaic.version = 11 : i64} {
  func.func @_residual_linear_kernel(%arg0: i32, %arg1: i32, %arg2: i32, %arg3: memref<8x128xf32, #tpu.memory_space<vmem>>, %arg4: memref<128x128xf32, #tpu.memory_space<vmem>>, %arg5: memref<8x128xf32, #tpu.memory_space<vmem>>, %arg6: memref<1x128xf32, #tpu.memory_space<vmem>>, %arg7: memref<8x128xf32, #tpu.memory_space<vmem>>, %arg8: memref<8x128xf32, #tpu.memory_space<vmem>>) attributes {dimension_semantics = [#tpu.dimension_semantics<parallel>, #tpu.dimension_semantics<parallel>, #tpu.dimension_semantics<arbitrary>], iteration_bounds = array<i64: 1, 1, 1>, scalar_prefetch = 0 : i64, scratch_operands = 1 : i64, tpu.core_type = #tpu.core_type<tc>, window_params = [{transform_indices = @transform_0, window_bounds = array<i64: 8, 128>}, {transform_indices = @transform_1, window_bounds = array<i64: 128, 128>}, {transform_indices = @transform_2, window_bounds = array<i64: 8, 128>}, {transform_indices = @transform_3, window_bounds = array<i64: 1, 128>}, {transform_indices = @transform_4, window_bounds = array<i64: 8, 128>}]} {
    %c0_i32 = arith.constant 0 : i32
    %0 = arith.cmpi eq, %arg2, %c0_i32 : i32
    %1 = arith.extui %0 : i1 to i32
    %c0_i32_0 = arith.constant 0 : i32
    %2 = arith.cmpi ne, %1, %c0_i32_0 : i32
    scf.if %2 {
      %cst_10 = arith.constant 0.000000e+00 : f32
      %12 = vector.broadcast %cst_10 : f32 to vector<8x128xf32>
      %c0_11 = arith.constant 0 : index
      %c0_12 = arith.constant 0 : index
      %13 = vector.load %arg8[%c0_11, %c0_12] : memref<8x128xf32, #tpu.memory_space<vmem>>, vector<8x128xf32>
      tpu.vector_store %arg8[%c0_11, %c0_12], %12 {strides = array<i32>} : memref<8x128xf32, #tpu.memory_space<vmem>>, vector<8x128xf32>,
    } else {
    }
    %c0 = arith.constant 0 : index
    %c0_1 = arith.constant 0 : index
    %3 = vector.load %arg8[%c0, %c0_1] : memref<8x128xf32, #tpu.memory_space<vmem>>, vector<8x128xf32>
    %c0_2 = arith.constant 0 : index
    %c0_3 = arith.constant 0 : index
    %4 = vector.load %arg3[%c0_2, %c0_3] : memref<8x128xf32, #tpu.memory_space<vmem>>, vector<8x128xf32>
    %c0_4 = arith.constant 0 : index
    %c0_5 = arith.constant 0 : index
    %5 = vector.load %arg4[%c0_4, %c0_5] : memref<128x128xf32, #tpu.memory_space<vmem>>, vector<128x128xf32>
    %cst = arith.constant dense<0.000000e+00> : vector<8x128xf32>
    %6 = tpu.matmul %4, %5, %cst {dimension_numbers = #tpu.dot_dimension_numbers<[1], [1], [0], [0], [0, 0, 1, 0], [], []>} : vector<8x128xf32>, vector<128x128xf32>, vector<8x128xf32> -> vector<8x128xf32>
    %7 = arith.addf %3, %6 : vector<8x128xf32>
    %c0_6 = arith.constant 0 : index
    %c0_7 = arith.constant 0 : index
    %8 = vector.load %arg8[%c0_6, %c0_7] : memref<8x128xf32, #tpu.memory_space<vmem>>, vector<8x128xf32>
    tpu.vector_store %arg8[%c0_6, %c0_7], %7 {strides = array<i32>} : memref<8x128xf32, #tpu.memory_space<vmem>>, vector<8x128xf32>,
    %c0_i32_8 = arith.constant 0 : i32
    %9 = arith.cmpi eq, %arg2, %c0_i32_8 : i32
    %10 = arith.extui %9 : i1 to i32
    %c0_i32_9 = arith.constant 0 : i32
    %11 = arith.cmpi ne, %10, %c0_i32_9 : i32
    scf.if %11 {
      %c0_10 = arith.constant 0 : index
      %c0_11 = arith.constant 0 : index
      %12 = vector.load %arg8[%c0_10, %c0_11] : memref<8x128xf32, #tpu.memory_space<vmem>>, vector<8x128xf32>
      %c0_12 = arith.constant 0 : index
      %c0_13 = arith.constant 0 : index
      %13 = vector.load %arg6[%c0_12, %c0_13] : memref<1x128xf32, #tpu.memory_space<vmem>>, vector<1x128xf32>
      %14 = vector.broadcast %13 : vector<1x128xf32> to vector<8x128xf32>
      %15 = arith.addf %12, %14 : vector<8x128xf32>
      %cst_14 = arith.constant 0.000000e+00 : f32
      %16 = vector.broadcast %cst_14 : f32 to vector<8x128xf32>
      %17 = arith.maximumf %15, %16 : vector<8x128xf32>
      %c0_15 = arith.constant 0 : index
      %c0_16 = arith.constant 0 : index
      %18 = vector.load %arg5[%c0_15, %c0_16] : memref<8x128xf32, #tpu.memory_space<vmem>>, vector<8x128xf32>
      %19 = arith.addf %18, %17 : vector<8x128xf32>
      %c0_17 = arith.constant 0 : index
      %c0_18 = arith.constant 0 : index
      %20 = vector.load %arg7[%c0_17, %c0_18] : memref<8x128xf32, #tpu.memory_space<vmem>>, vector<8x128xf32>
      tpu.vector_store %arg7[%c0_17, %c0_18], %19 {strides = array<i32>} : memref<8x128xf32, #tpu.memory_space<vmem>>, vector<8x128xf32>,
    } else {
    }
    return
  }
  func.func @transform_0(%arg0: i32, %arg1: i32, %arg2: i32) -> (i32, i32) {
    %c0_i32 = arith.constant 0 : i32
    return %arg0, %arg2 : i32, i32
  }
  func.func @transform_1(%arg0: i32, %arg1: i32, %arg2: i32) -> (i32, i32) {
    %c0_i32 = arith.constant 0 : i32
    return %arg1, %arg2 : i32, i32
  }
  func.func @transform_2(%arg0: i32, %arg1: i32, %arg2: i32) -> (i32, i32) {
    %c0_i32 = arith.constant 0 : i32
    return %arg0, %arg1 : i32, i32
  }
  func.func @transform_3(%arg0: i32, %arg1: i32, %arg2: i32) -> (i32, i32) {
    %c0_i32 = arith.constant 0 : i32
    %c0_i32_0 = arith.constant 0 : i32
    return %c0_i32, %arg1 : i32, i32
  }
  func.func @transform_4(%arg0: i32, %arg1: i32, %arg2: i32) -> (i32, i32) {
    %c0_i32 = arith.constant 0 : i32
    return %arg0, %arg1 : i32, i32
  }
}

</mosaic_0001>

<llo_original>
// kernel: residual_linear.1
$region0: #{residual_linear.1}
  #allocation0 [shape = 'u32[]', space=smem, size = 0x4, offset = 0x4, fixed_abs, tag = 'smem constant byte address 0x4 - core index']
  #allocation1 [shape = 'u32[144,128]{1,0:T(1,128)}', space=vmem, size = 0x12000, scoped, tag = 'internal scratch']
  #allocation2 [shape = 'f32[8,128]{1,0:T(8,128)}', space=vmem, size = 0x1000, scoped, tag = 'scratch operand']
  %s0 = inlined_call_operand.vmem [shape: f32[8,128], index: 0, kind: input, shape index: {}, may-alias: {0,2}]
  %s1 = inlined_call_operand.vmem [shape: f32[128,128], index: 1, kind: input, shape index: {}]
  %s2 = inlined_call_operand.vmem [shape: f32[8,128], index: 2, kind: input, shape index: {}, may-alias: {0,2}]
  %s3 = inlined_call_operand.vmem [shape: f32[1,128], index: 3, kind: input, shape index: {}]
  %s4 = inlined_call_operand.hbm [shape: f32[8,128], index: 4, kind: output, shape index: {}]
  %s5 = sld [smem:[#allocation0]]
  $region34: #{residual_linear.1} parent=0
    _
  %s7 = ssub.s32 1, %s5
  %s8 = scalar_select 0, %s7, %s5
  $region1: #{residual_linear.1} parent=0
    #allocation3 [shape = 'u8[4096]{0}', space=vmem, size = 0x1000, scoped, tag = 'output window, operand 0, single buffered']
    #allocation4 [shape = 's32[1]{0}', space=sflag, size = 0x4, scoped, tag = 'scoped memory for residual_linear.1']
    %9 = vsyncpa [#allocation4], 0
    // Predicated region
    $region2: #{residual_linear.1} parent=1 // pred_check
      _
    $region3: #{residual_linear.1} parent=1 // pred_check_branch
      %11 = sbr.rel (0) target = $region5
    $region4: #{residual_linear.1} parent=1 // pred_region
      _
    $region5: #{residual_linear.1} parent=1 // pred_fallthru
      _
    // Predicated region
    $region6: #{residual_linear.1} parent=1 // pred_check
      _
    $region7: #{residual_linear.1} parent=1 // pred_check_branch
      %13 = sbr.rel (0) target = $region9
    $region8: #{residual_linear.1} parent=1 // pred_region
      _
    $region9: #{residual_linear.1} parent=1 // pred_fallthru
      _
    // Predicated region
    $region10: #{residual_linear.1} parent=1 // pred_check
      _
    $region11: #{residual_linear.1} parent=1 // pred_check_branch
      %15 = sbr.rel (0) target = $region13
    $region12: #{residual_linear.1} parent=1 // pred_region
      _
    $region13: #{residual_linear.1} parent=1 // pred_fallthru
      _
    // Predicated region
    $region14: #{residual_linear.1} parent=1 // pred_check
      _
    $region15: #{residual_linear.1} parent=1 // pred_check_branch
      %17 = sbr.rel (0) target = $region17
    $region16: #{residual_linear.1} parent=1 // pred_region
      _
    $region17: #{residual_linear.1} parent=1 // pred_fallthru
      _
    %p18 = scmp.eq.s32.totalorder 0, 0
    // Predicated region
    $region18: #{residual_linear.1} parent=1 // pred_check
      %p19 = pneg %p18
    $region19: #{residual_linear.1} parent=1 // pred_check_branch
      %21 = sbr.rel (%p19) target = $region21
    $region20: #{residual_linear.1} parent=1 // pred_region
      %22 = vst [vmem:[#allocation2] sm:$0xff] 0.0
    $region21: #{residual_linear.1} parent=1 // pred_fallthru
      _
    %v23 = vld [vmem:[#allocation2] sm:$0xff]
    %v24 = vld [vmem:[%s0] sm:$0xff]
    %v25 = vld [vmem:[%s1] sm:$0xff]
    %v26 = vld [vmem:[%s1 + $0x8] sm:$0xff]
    %v27 = vld [vmem:[%s1 + $0x10] sm:$0xff]
    %v28 = vld [vmem:[%s1 + $0x18] sm:$0xff]
    %v29 = vld [vmem:[%s1 + $0x20] sm:$0xff]
    %v30 = vld [vmem:[%s1 + $0x28] sm:$0xff]
    %v31 = vld [vmem:[%s1 + $0x30] sm:$0xff]
    %v32 = vld [vmem:[%s1 + $0x38] sm:$0xff]
    %v33 = vld [vmem:[%s1 + $0x40] sm:$0xff]
    %v34 = vld [vmem:[%s1 + $0x48] sm:$0xff]
    %v35 = vld [vmem:[%s1 + $0x50] sm:$0xff]
    %v36 = vld [vmem:[%s1 + $0x58] sm:$0xff]
    %v37 = vld [vmem:[%s1 + $0x60] sm:$0xff]
    %v38 = vld [vmem:[%s1 + $0x68] sm:$0xff]
    %v39 = vld [vmem:[%s1 + $0x70] sm:$0xff]
    %v40 = vld [vmem:[%s1 + $0x78] sm:$0xff]
    %41 = vmatprep.subr.mxu0 0.0
    %42 = vmatpush1.xpose.msra.mxu0 %v25
    %43 = vmatprep.subr.mxu0 0.0
    %44 = vmatpush1.xpose.msra.mxu0 %v26
    %45 = vmatprep.subr.mxu0 0.0
    %46 = vmatpush1.xpose.msra.mxu0 %v27
    %47 = vmatprep.subr.mxu0 0.0
    %48 = vmatpush1.xpose.msra.mxu0 %v28
    %49 = vmatprep.subr.mxu0 0.0
    %50 = vmatpush1.xpose.msra.mxu0 %v29
    %51 = vmatprep.subr.mxu0 0.0
    %52 = vmatpush1.xpose.msra.mxu0 %v30
    %53 = vmatprep.subr.mxu0 0.0
    %54 = vmatpush1.xpose.msra.mxu0 %v31
    %55 = vmatprep.subr.mxu0 0.0
    %56 = vmatpush1.xpose.msra.mxu0 %v32
    %57 = vmatprep.subr.mxu0 0.0
    %58 = vmatpush1.xpose.msra.mxu0 %v33
    %59 = vmatprep.subr.mxu0 0.0
    %60 = vmatpush1.xpose.msra.mxu0 %v34
    %61 = vmatprep.subr.mxu0 0.0
    %62 = vmatpush1.xpose.msra.mxu0 %v35
    %63 = vmatprep.subr.mxu0 0.0
    %64 = vmatpush1.xpose.msra.mxu0 %v36
    %65 = vmatprep.subr.mxu0 0.0
    %66 = vmatpush1.xpose.msra.mxu0 %v37
    %67 = vmatprep.subr.mxu0 0.0
    %68 = vmatpush1.xpose.msra.mxu0 %v38
    %69 = vmatprep.subr.mxu0 0.0
    %70 = vmatpush1.xpose.msra.mxu0 %v39
    %71 = vmatprep.subr.mxu0 0.0
    %72 = vmatpush1.xpose.msra.mxu0 %v40
    %73 = vmatprep.subr.mxu0 0.0
    %74 = vmatpush1.xpose.msra.mxu0 0.0
    %75 = vmatprep.subr.mxu0 0.0
    %76 = vmatpush1.xpose.msra.mxu0 0.0
    %77 = vmatprep.subr.mxu0 0.0
    %78 = vmatpush1.xpose.msra.mxu0 0.0
    %79 = vmatprep.subr.mxu0 0.0
    %80 = vmatpush1.xpose.msra.mxu0 0.0
    %81 = vmatprep.subr.mxu0 0.0
    %82 = vmatpush1.xpose.msra.mxu0 0.0
    %83 = vmatprep.subr.mxu0 0.0
    %84 = vmatpush1.xpose.msra.mxu0 0.0
    %85 = vmatprep.subr.mxu0 0.0
    %86 = vmatpush1.xpose.msra.mxu0 0.0
    %87 = vmatprep.subr.mxu0 0.0
    %88 = vmatpush1.xpose.msra.mxu0 0.0
    %89 = vmatprep.subr.mxu0 0.0
    %90 = vmatpush1.xpose.msra.mxu0 0.0
    %91 = vmatprep.subr.mxu0 0.0
    %92 = vmatpush1.xpose.msra.mxu0 0.0
    %93 = vmatprep.subr.mxu0 0.0
    %94 = vmatpush1.xpose.msra.mxu0 0.0
    %95 = vmatprep.subr.mxu0 0.0
    %96 = vmatpush1.xpose.msra.mxu0 0.0
    %97 = vmatprep.subr.mxu0 0.0
    %98 = vmatpush1.xpose.msra.mxu0 0.0
    %99 = vmatprep.subr.mxu0 0.0
    %100 = vmatpush1.xpose.msra.mxu0 0.0
    %101 = vmatprep.subr.mxu0 0.0
    %102 = vmatpush1.xpose.msra.mxu0 0.0
    %103 = vmatprep.subr.mxu0 0.0
    %104 = vmatpush1.xpose.msra.mxu0 0.0
    %105 = vmatprep.mubr.f32.mxu0 0.0
    %106 = vmatmul.mubr.f32.gmra.mrb[0].mxu0 %v24
    %v107 = vpop.f32.mrb[0].mxu0
    %v108 = vadd.f32 0.0, %v107
    %v109 = vpop.f32.mrb[0].mxu0
    %110 = vdwg.mxu0
    %v111 = vadd.f32 %v23, %v108
    %112 = vst [vmem:[#allocation2] sm:$0xff] %v111
    // Predicated region
    $region22: #{residual_linear.1} parent=1 // pred_check
      %p113 = pneg %p18
    $region23: #{residual_linear.1} parent=1 // pred_check_branch
      %115 = sbr.rel (%p113) target = $region25
    $region24: #{residual_linear.1} parent=1 // pred_region
      %v116 = vld [vmem:[#allocation2] sm:$0xff]
      %v117 = vld [vmem:[%s3] sm:$0x1]
      %v119 = vlaneseq
      %v120 = vshrl.u32 %v119, 7
      %v121 = vsub.s32 0, %v120
      %v122 = vrot.slane %v117, %v121
      %v124 = vadd.f32 %v116, %v122
      %v125 = vmax.f32 %v124, 0.0
      %v126 = vld [vmem:[%s2] sm:$0xff]
      %v127 = vadd.f32 %v126, %v125
      %128 = vst [vmem:[#allocation3] sm:$0xff] %v127
    $region25: #{residual_linear.1} parent=1 // pred_fallthru
      _
    // Predicated region
    $region26: #{residual_linear.1} parent=1 // pred_check
      _
    $region27: #{residual_linear.1} parent=1 // pred_check_branch
      %130 = sbr.rel (0) target = $region29
    $region28: #{residual_linear.1} parent=1 // pred_region
      %s132 = ssub.s32 128, 128
      %133 = vsyncadd [#allocation4], %s132
      %s135 = sshll.u32 [#allocation3], 4
      %s136 = int_to_ptr.vmem [resolvable:$true] %s135
      %138 = dma.vmem_to_hbm [thread:$0]  %s136, 128, %s4, [#allocation4]
    $region29: #{residual_linear.1} parent=1 // pred_fallthru
      _
    // Predicated region
    $region30: #{residual_linear.1} parent=1 // pred_check
      _
    $region31: #{residual_linear.1} parent=1 // pred_check_branch
      %140 = sbr.rel (0) target = $region33
    $region32: #{residual_linear.1} parent=1 // pred_region
      %141 = dma.done [#allocation4], 128
    $region33: #{residual_linear.1} parent=1 // pred_fallthru
      _
    %142 = vsyncpa [#allocation4], 1

</llo_original>
